<compile_context>
chip_gen: v5e
topology: v5e:2x2
jax: 0.10.0
libtpu: 0.0.40
codegen_flags: <defaults>
</compile_context>

<pallas_src>
import functools

import jax
import jax.numpy as jnp
from jax.experimental import pallas as pl
from jax.experimental.pallas import tpu as pltpu


# ----------------------------- configuration --------------------------------
CFG = dict(stride=8, head_dim=32, bk_dim_2d=24, bk_dim_3d=40)
IMG_SIZE = 32
LEN_CLIP = 8
NUM_CLASSES = 20
ANCHOR_SIZE = [[16.0, 16.0], [32.0, 32.0], [64.0, 64.0]]
NUM_ANCHORS = len(ANCHOR_SIZE)
PRED_DIM = NUM_ANCHORS * (1 + NUM_CLASSES + 4)        # 75 prediction channels
REG_OFF = NUM_ANCHORS * (1 + NUM_CLASSES)             # 63: start of reg channels

# packed-operand geometry (biases folded into weights via a ones input column)
CIN = 8                                      # 3 (2d) + 3 (3d) + 1 (ones) + 1 pad
ONE1 = CFG["bk_dim_2d"] + CFG["bk_dim_3d"]   # 64: ones column index in hidden h
HID1 = 80                                    # 64 real + 1 ones + pad (16-aligned for bf16)
ONE2 = CFG["head_dim"]                       # 32: ones column index in encoder out
HID2 = 48                                    # 32 real + 1 ones + pad (16-aligned)
OUT_W = 128                                  # lane-dense padded output width
BOX_LO = 80                                  # decoded boxes at lanes [80, 92)
BOX_HI = BOX_LO + 4 * NUM_ANCHORS            # 92
WH_LO = BOX_HI                               # duplicated wh logits at lanes [92, 104)
WH_HI = WH_LO + 4 * NUM_ANCHORS              # 104
WH_SHIFT = 4 * NUM_ANCHORS                   # lane distance wh -> xy (12)


# ------------------------------ small helpers --------------------------------
def _floor_divmod(x, d):
    """(x // d, x % d) for a non-negative int32 vector and positive python int d.
    Power-of-two divisors (all demo shapes) use native shift/mask VPU ops."""
    if d & (d - 1) == 0:
        s = d.bit_length() - 1
        return x >> s, x & (d - 1)
    # TODO(synk): general-divisor path (unused at demo shapes).
    return x // d, x % d


# ------------------------------ Pallas kernel --------------------------------
def yowo_head_kernel(x_ref, w1_ref, w2_ref, w3_ref, out_ref, *,
                     tm, stride, n_pix_img, fmp_w, anchor_size):
    """Fused head: block-diag 2D/3D 1x1 projections, channel encoder, prediction
    conv and decode_bbox epilogue.  bf16 MXU chain with f32 accumulation, f32
    elementwise epilogue, anchors synthesised in-kernel, one unmasked
    lane-dense [TM, 128] bf16 store per tile."""
    # --- bf16 MXU chain (f32 accumulation) -----------------------------------
    h = jnp.maximum(jnp.dot(x_ref[...], w1_ref[...],
                            preferred_element_type=jnp.float32), 0.0)
    e = jnp.maximum(jnp.dot(h.astype(jnp.bfloat16), w2_ref[...],
                            preferred_element_type=jnp.float32), 0.0)
    # single pred matmul: lanes 0..74 = conf|cls|reg, 80..91 = dup xy logits
    # (tx,ty,tx,ty per anchor), 92..103 = dup wh logits (tw,th,tw,th per anchor),
    # all other lanes exactly zero (zero-padded weights, folded biases).
    raw = jnp.dot(e.astype(jnp.bfloat16), w3_ref[...],
                  preferred_element_type=jnp.float32)            # [TM, 128] f32

    # --- lane bookkeeping (compile-time-constant selects, VALU slack) ---------
    lane = jax.lax.broadcasted_iota(jnp.int32, raw.shape, 1)
    in_box = (lane >= BOX_LO) & (lane < BOX_HI)
    j = lane & 3                          # (x1,y1,x2,y2) offset; BOX_LO % 4 == 0
    is_y = (j & 1) == 1
    aoff = (lane - BOX_LO) >> 2           # anchor index (only meaningful in-box)

    # signed half anchor wh per lane: (-.5aw, -.5ah, +.5aw, +.5ah) per anchor
    aw_l, ah_l = anchor_size[-1]
    half = jnp.where(is_y, 0.5 * ah_l, 0.5 * aw_l)
    for ai in range(NUM_ANCHORS - 1):
        w_i, h_i = anchor_size[ai]
        half = jnp.where(aoff == ai, jnp.where(is_y, 0.5 * h_i, 0.5 * w_i), half)
    signed_half_wh = jnp.where(j < 2, -half, half)

    # --- per-row anchor centres from the global row index ---------------------
    row = jax.lax.broadcasted_iota(jnp.int32, raw.shape, 0) + pl.program_id(0) * tm
    _, pix = _floor_divmod(row, n_pix_img)          # pixel index within an image
    py, px = _floor_divmod(pix, fmp_w)
    anc_c = jnp.where(is_y, py.astype(jnp.float32),
                      px.astype(jnp.float32)) * stride

    # --- decode_bbox epilogue (sigmoid/exp on the EUP, selects on the VPU) ----
    # xy = sigmoid(t_xy)*stride + anc_xy ;  wh = exp(t_wh)*anc_wh
    xy = jax.nn.sigmoid(raw) * stride + anc_c
    # exp(wh logits) lives on lanes 92..103; rotate them onto the box lanes
    # 80..91 (XLU lane rotation, matches jnp.roll semantics).
    wh = pltpu.roll(jnp.exp(raw), OUT_W - WH_SHIFT, axis=1)
    box = xy + signed_half_wh * wh                  # (x1, y1, x2, y2) per anchor
    out_ref[...] = jnp.where(in_box, box, raw).astype(out_ref.dtype)


# ------------------------- per-generation tiling ------------------------------
def _tpu_info():
    """(VMEM bytes, TensorCores per jax device) with conservative fallbacks."""
    vmem_bytes, num_cores = 64 << 20, 1
    try:
        vmem_bytes = int(pltpu.get_tpu_info().vmem_capacity_bytes)
    except Exception:
        pass
    try:
        kind = jax.devices()[0].device_kind.lower()
        # 2 TensorCores per jax device: v4 megacore, v5p, v7x; 1 on v5e/v6e.
        if "v7" in kind or "v5p" in kind or ("v4" in kind and "lite" not in kind):
            num_cores = 2
    except Exception:
        pass
    return vmem_bytes, num_cores


def _row_tile_cap(vmem_bytes):
    """Row-tile cap from VMEM: per-row bytes in flight are the double-buffered
    bf16 x rows + bf16 output rows (weights are a one-off ~25 KB)."""
    per_row = 2 * (2 * CIN + 2 * OUT_W)              # ~544 B/row double-buffered
    cap = (vmem_bytes // 4) // per_row               # leave plenty of headroom
    return int(min(4096, max(64, (cap // 16) * 16)))


def pick_tm(m_pix, *, cap, num_cores):
    """Largest row tile (multiple of 16 for bf16 blocks, <= cap) dividing m_pix.
    On 2-TC parts prefer >= 2 pipelined steps per core; on single-TC parts
    (v5e/v6e) a single grid step is best when the problem fits one tile."""
    cap = min(cap, m_pix)
    cands = [t for t in range(16, cap + 1, 16) if m_pix % t == 0]
    if not cands:                                    # 8-row granularity fallback
        cands = [t for t in range(8, cap + 1, 8) if m_pix % t == 0]
    assert cands, "number of feature-map rows must be a multiple of 8"
    if num_cores >= 2:
        for min_steps in (2 * num_cores, num_cores):
            good = [t for t in cands if m_pix // t >= min_steps]
            if good:
                return max(good)
    return max(cands)


# ------------------------------- wrappers ------------------------------------
def run_head(x_aug, packed, *, stride, n_pix_img, fmp_w):
    """x_aug: [M_pix, CIN] bf16 rows.  Returns lane-dense [M_pix, 128] bf16."""
    m_pix = x_aug.shape[0]
    vmem_bytes, num_cores = _tpu_info()
    tm = pick_tm(m_pix, cap=_row_tile_cap(vmem_bytes), num_cores=num_cores)
    w1, w2, w3 = packed
    row = lambda i: (i, 0)
    full = lambda i: (0, 0)
    kern = functools.partial(
        yowo_head_kernel, tm=tm, stride=float(stride),
        n_pix_img=int(n_pix_img), fmp_w=int(fmp_w),
        anchor_size=tuple(tuple(float(v) for v in a) for a in ANCHOR_SIZE))
    return pl.pallas_call(
        kern,
        out_shape=jax.ShapeDtypeStruct((m_pix, OUT_W), jnp.bfloat16),
        grid_spec=pltpu.PrefetchScalarGridSpec(
            num_scalar_prefetch=0,
            grid=(m_pix // tm,),
            in_specs=[
                pl.BlockSpec((tm, CIN), row),        # streamed bf16 pixel rows
                pl.BlockSpec(w1.shape, full),        # block-diag 2D/3D proj (+bias)
                pl.BlockSpec(w2.shape, full),        # channel encoder (+bias)
                pl.BlockSpec(w3.shape, full),        # pred + dup xy/wh cols (+bias)
            ],
            out_specs=pl.BlockSpec((tm, OUT_W), row),
        ),
        compiler_params=pltpu.CompilerParams(
            dimension_semantics=("parallel",)),
    )(x_aug, w1, w2, w3)


# --------------------------- parameter packing --------------------------------
def pack_params(params):
    """Fold the 9 small YOWO params into 3 zero-padded, bias-augmented bf16
    matmul operands (a ones column carries the biases through every layer)."""
    (w2d, b2d, w3d, b3d, wenc2, wenc3, benc, wpred, bpred) = params
    d2, d3, hd = CFG["bk_dim_2d"], CFG["bk_dim_3d"], CFG["head_dim"]

    # layer 1: block-diagonal [x2d | x3d | 1 | 0] @ W1 -> [h2d | h3d | 1 | 0]
    w1 = jnp.zeros((CIN, HID1), jnp.float32)
    w1 = w1.at[0:3, 0:d2].set(w2d)
    w1 = w1.at[3:6, d2:d2 + d3].set(w3d)
    w1 = w1.at[6, 0:d2].set(b2d[0])
    w1 = w1.at[6, d2:d2 + d3].set(b3d[0])
    w1 = w1.at[6, ONE1].set(1.0)

    # layer 2: channel encoder on concat([h2d, h3d]) -> [enc | 1 | 0]
    w2 = jnp.zeros((HID1, HID2), jnp.float32)
    w2 = w2.at[0:d2, 0:hd].set(wenc2)
    w2 = w2.at[d2:d2 + d3, 0:hd].set(wenc3)
    w2 = w2.at[ONE1, 0:hd].set(benc[0])
    w2 = w2.at[ONE1, ONE2].set(1.0)

    # layer 3 (single matrix): real pred channels (0..74), duplicated xy reg
    # logits (80..91) and duplicated wh reg logits (92..103).
    reg_w = wpred[:, REG_OFF:].reshape(hd, NUM_ANCHORS, 4)      # (tx,ty,tw,th)
    reg_b = bpred[0, REG_OFF:].reshape(NUM_ANCHORS, 4)
    xy_w = jnp.concatenate([reg_w[..., 0:2], reg_w[..., 0:2]], -1).reshape(hd, -1)
    xy_b = jnp.concatenate([reg_b[..., 0:2], reg_b[..., 0:2]], -1).reshape(-1)
    wh_w = jnp.concatenate([reg_w[..., 2:4], reg_w[..., 2:4]], -1).reshape(hd, -1)
    wh_b = jnp.concatenate([reg_b[..., 2:4], reg_b[..., 2:4]], -1).reshape(-1)

    w3 = jnp.zeros((HID2, OUT_W), jnp.float32)
    w3 = w3.at[0:hd, 0:PRED_DIM].set(wpred)
    w3 = w3.at[ONE2, 0:PRED_DIM].set(bpred[0])
    w3 = w3.at[0:hd, BOX_LO:BOX_HI].set(xy_w)
    w3 = w3.at[ONE2, BOX_LO:BOX_HI].set(xy_b)
    w3 = w3.at[0:hd, WH_LO:WH_HI].set(wh_w)
    w3 = w3.at[ONE2, WH_LO:WH_HI].set(wh_b)

    return (w1.astype(jnp.bfloat16),
            w2.astype(jnp.bfloat16),
            w3.astype(jnp.bfloat16))


# --------------------------- module-level helpers -----------------------------
def generate_anchors(img_size, stride, anchor_size):
    """Matches YOWO.generate_anchors (torch.meshgrid default 'ij' indexing).
    Used only by the pure-JAX reference; the kernel synthesises anchors."""
    fmp_h = fmp_w = img_size // stride
    ys, xs = jnp.meshgrid(jnp.arange(fmp_h), jnp.arange(fmp_w), indexing="ij")
    anchor_xy = jnp.stack([xs, ys], axis=-1).astype(jnp.float32).reshape(-1, 2)
    anchor_xy = jnp.repeat(anchor_xy[:, None, :], NUM_ANCHORS, axis=1) * stride
    anchor_wh = jnp.tile(jnp.asarray(anchor_size, jnp.float32)[None],
                         (fmp_h * fmp_w, 1, 1))
    return jnp.concatenate([anchor_xy, anchor_wh], axis=-1).reshape(-1, 4)


def avg_pool_nchw(x, stride):
    """[B, C, H, W] -> [B, C, H//s, W//s] average pool (synthetic downsample)."""
    B, C, H, W = x.shape
    return x.reshape(B, C, H // stride, stride, W // stride, stride).mean(axis=(3, 5))


def init_params(key):
    k = jax.random.split(key, 9)
    s = 0.2
    w2d = jax.random.normal(k[0], (3, CFG["bk_dim_2d"]), jnp.float32) * s
    b2d = jax.random.normal(k[1], (1, CFG["bk_dim_2d"]), jnp.float32) * s
    w3d = jax.random.normal(k[2], (3, CFG["bk_dim_3d"]), jnp.float32) * s
    b3d = jax.random.normal(k[3], (1, CFG["bk_dim_3d"]), jnp.float32) * s
    wenc2 = jax.random.normal(k[4], (CFG["bk_dim_2d"], CFG["head_dim"]), jnp.float32) * s
    wenc3 = jax.random.normal(k[5], (CFG["bk_dim_3d"], CFG["head_dim"]), jnp.float32) * s
    benc = jax.random.normal(k[6], (1, CFG["head_dim"]), jnp.float32) * s
    wpred = jax.random.normal(k[7], (CFG["head_dim"], PRED_DIM), jnp.float32) * s
    bpred = jax.random.normal(k[8], (1, PRED_DIM), jnp.float32) * s
    return (w2d, b2d, w3d, b3d, wenc2, wenc3, benc, wpred, bpred)


def yowo_forward(video_clips, params):
    """video_clips: [B, 3, T, H, W] (PyTorch NCTHW). Returns conf/cls/box preds."""
    B = video_clips.shape[0]
    stride = CFG["stride"]
    fmp = IMG_SIZE // stride
    K, C = NUM_ANCHORS, NUM_CLASSES

    # --- glue: key frame + clip downsampling (stand-in for backbone strides) ---
    key_frame = video_clips[:, :, -1, :, :]                     # [B, 3, H, W]
    x2d = avg_pool_nchw(key_frame, stride)                      # [B, 3, Hf, Wf]
    x3d = avg_pool_nchw(video_clips.mean(axis=2), stride)       # [B, 3, Hf, Wf]

    # NCHW -> channels-last rows [B*Hf*Wf, 3]; augment with ones (bias) + pad;
    # bf16 rows halve the streamed input bytes (kernel accumulates in f32).
    x2d_rows = jnp.transpose(x2d, (0, 2, 3, 1)).reshape(-1, 3)
    x3d_rows = jnp.transpose(x3d, (0, 2, 3, 1)).reshape(-1, 3)
    m_pix = x2d_rows.shape[0]
    x_aug = jnp.concatenate(
        [x2d_rows, x3d_rows,
         jnp.ones((m_pix, 1), jnp.float32), jnp.zeros((m_pix, 1), jnp.float32)],
        axis=-1).astype(jnp.bfloat16)                            # [M_pix, CIN]

    packed = pack_params(params)

    # --- single fused Pallas kernel (backbone proj + encoder + pred + decode) ---
    out = run_head(x_aug, packed, stride=stride,
                   n_pix_img=fmp * fmp, fmp_w=fmp)               # [M_pix, 128] bf16
    out4 = out.astype(jnp.float32).reshape(B, fmp, fmp, OUT_W)   # NHWC, padded

    # channel split exactly as pred[:, :K]/[K:K(1+C)]/... .permute().view(...)
    conf_pred = out4[..., :K].reshape(B, -1, 1)
    cls_pred = out4[..., K:K * (1 + C)].reshape(B, -1, C)
    box_pred = out4[..., BOX_LO:BOX_HI].reshape(B, -1, 4)        # decoded in-kernel
    return conf_pred, cls_pred, box_pred


# ----------------------------- pure-JAX reference -----------------------------
def reference_forward(video_clips, params, anchors):
    (w2d, b2d, w3d, b3d, wenc2, wenc3, benc, wpred, bpred) = params
    B = video_clips.shape[0]
    stride = CFG["stride"]
    fmp = IMG_SIZE // stride
    K, C = NUM_ANCHORS, NUM_CLASSES
    x2d = avg_pool_nchw(video_clips[:, :, -1], stride)
    x3d = avg_pool_nchw(video_clips.mean(axis=2), stride)
    x2d = jnp.transpose(x2d, (0, 2, 3, 1)).reshape(-1, 3)
    x3d = jnp.transpose(x3d, (0, 2, 3, 1)).reshape(-1, 3)
    h2d = jnp.maximum(x2d @ w2d + b2d, 0.0)
    h3d = jnp.maximum(x3d @ w3d + b3d, 0.0)
    enc = jnp.maximum(h2d @ wenc2 + h3d @ wenc3 + benc, 0.0)
    pred = (enc @ wpred + bpred).reshape(B, fmp, fmp, PRED_DIM)
    conf = pred[..., :K].reshape(B, -1, 1)
    cls = pred[..., K:K * (1 + C)].reshape(B, -1, C)
    reg = pred[..., K * (1 + C):].reshape(B, -1, 4)
    xy = jax.nn.sigmoid(reg[..., :2]) * stride + anchors[None, :, :2]
    wh = jnp.exp(reg[..., 2:]) * anchors[None, :, 2:]
    box = jnp.concatenate([xy - 0.5 * wh, xy + 0.5 * wh], axis=-1)
    return conf, cls, box


# ---------------------------------- main --------------------------------------
if __name__ == "__main__":
    key = jax.random.PRNGKey(0)
    k_in, k_par = jax.random.split(key)

    B, T = 2, LEN_CLIP
    video_clips = jax.random.normal(k_in, (B, 3, T, IMG_SIZE, IMG_SIZE), jnp.float32)

    params = init_params(k_par)
    anchors = generate_anchors(IMG_SIZE, CFG["stride"], ANCHOR_SIZE)

    conf_pred, cls_pred, box_pred = yowo_forward(video_clips, params)
    jax.block_until_ready((conf_pred, cls_pred, box_pred))

    # sanity check against an independent pure-JAX f32 reference that uses the
    # ORIGINAL (unpacked) parameters.  Tolerances account for bf16 matmul
    # operands / bf16 kernel output / re-associated packed weights; box values
    # are O(1e2) (anchors up to 64 px).
    rconf, rcls, rbox = reference_forward(video_clips, params, anchors)
    M = (IMG_SIZE // CFG["stride"]) ** 2 * NUM_ANCHORS
    assert conf_pred.shape == (B, M, 1)
    assert cls_pred.shape == (B, M, NUM_CLASSES)
    assert box_pred.shape == (B, M, 4)
    assert jnp.allclose(conf_pred, rconf, atol=3e-2, rtol=3e-2)
    assert jnp.allclose(cls_pred, rcls, atol=3e-2, rtol=3e-2)
    assert jnp.allclose(box_pred, rbox, atol=1.5, rtol=3e-2)

    print("KERNEL_OK")
</pallas_src>

<mosaic_0001>
module attributes {stable_mosaic.version = 11 : i64} {
  func.func @yowo_head_kernel(%arg0: i32, %arg1: memref<32x8xbf16, #tpu.memory_space<vmem>>, %arg2: memref<8x80xbf16, #tpu.memory_space<vmem>>, %arg3: memref<80x48xbf16, #tpu.memory_space<vmem>>, %arg4: memref<48x128xbf16, #tpu.memory_space<vmem>>, %arg5: memref<32x128xbf16, #tpu.memory_space<vmem>>) attributes {dimension_semantics = [#tpu.dimension_semantics<parallel>], iteration_bounds = array<i64: 1>, scalar_prefetch = 0 : i64, scratch_operands = 0 : i64, tpu.core_type = #tpu.core_type<tc>, window_params = [{transform_indices = @transform_0, window_bounds = array<i64: 32, 8>}, {pipeline_mode = #tpu.pipeline_mode<synchronous>, transform_indices = @transform_1, window_bounds = array<i64: 8, 80>}, {pipeline_mode = #tpu.pipeline_mode<synchronous>, transform_indices = @transform_2, window_bounds = array<i64: 80, 48>}, {pipeline_mode = #tpu.pipeline_mode<synchronous>, transform_indices = @transform_3, window_bounds = array<i64: 48, 128>}, {transform_indices = @transform_4, window_bounds = array<i64: 32, 128>}]} {
    %c0 = arith.constant 0 : index
    %c0_0 = arith.constant 0 : index
    %0 = vector.load %arg1[%c0, %c0_0] : memref<32x8xbf16, #tpu.memory_space<vmem>>, vector<32x8xbf16>
    %c0_1 = arith.constant 0 : index
    %c0_2 = arith.constant 0 : index
    %1 = vector.load %arg2[%c0_1, %c0_2] : memref<8x80xbf16, #tpu.memory_space<vmem>>, vector<8x80xbf16>
    %cst = arith.constant dense<0.000000e+00> : vector<32x80xf32>
    %2 = tpu.matmul %0, %1, %cst {dimension_numbers = #tpu.dot_dimension_numbers<[1], [0], [0], [1], [0, 0, 1, 1], [], []>} : vector<32x8xbf16>, vector<8x80xbf16>, vector<32x80xf32> -> vector<32x80xf32>
    %cst_3 = arith.constant 0.000000e+00 : f32
    %3 = vector.broadcast %cst_3 : f32 to vector<32x80xf32>
    %4 = arith.maximumf %2, %3 : vector<32x80xf32>
    %5 = arith.truncf %4 : vector<32x80xf32> to vector<32x80xbf16>
    %c0_4 = arith.constant 0 : index
    %c0_5 = arith.constant 0 : index
    %6 = vector.load %arg3[%c0_4, %c0_5] : memref<80x48xbf16, #tpu.memory_space<vmem>>, vector<80x48xbf16>
    %cst_6 = arith.constant dense<0.000000e+00> : vector<32x48xf32>
    %7 = tpu.matmul %5, %6, %cst_6 {dimension_numbers = #tpu.dot_dimension_numbers<[1], [0], [0], [1], [0, 0, 1, 1], [], []>} : vector<32x80xbf16>, vector<80x48xbf16>, vector<32x48xf32> -> vector<32x48xf32>
    %cst_7 = arith.constant 0.000000e+00 : f32
    %8 = vector.broadcast %cst_7 : f32 to vector<32x48xf32>
    %9 = arith.maximumf %7, %8 : vector<32x48xf32>
    %10 = arith.truncf %9 : vector<32x48xf32> to vector<32x48xbf16>
    %c0_8 = arith.constant 0 : index
    %c0_9 = arith.constant 0 : index
    %11 = vector.load %arg4[%c0_8, %c0_9] : memref<48x128xbf16, #tpu.memory_space<vmem>>, vector<48x128xbf16>
    %cst_10 = arith.constant dense<0.000000e+00> : vector<32x128xf32>
    %12 = tpu.matmul %10, %11, %cst_10 {dimension_numbers = #tpu.dot_dimension_numbers<[1], [0], [0], [1], [0, 0, 1, 1], [], []>} : vector<32x48xbf16>, vector<48x128xbf16>, vector<32x128xf32> -> vector<32x128xf32>
    %13 = tpu.iota {dimensions = array<i32: 1>} : vector<32x128xi32>
    %c80_i32 = arith.constant 80 : i32
    %14 = vector.broadcast %c80_i32 : i32 to vector<32x128xi32>
    %15 = arith.cmpi sge, %13, %14 : vector<32x128xi32>
    %c92_i32 = arith.constant 92 : i32
    %16 = vector.broadcast %c92_i32 : i32 to vector<32x128xi32>
    %17 = arith.cmpi slt, %13, %16 : vector<32x128xi32>
    %18 = arith.andi %15, %17 : vector<32x128xi1>
    %c3_i32 = arith.constant 3 : i32
    %19 = vector.broadcast %c3_i32 : i32 to vector<32x128xi32>
    %20 = arith.andi %13, %19 : vector<32x128xi32>
    %c1_i32 = arith.constant 1 : i32
    %21 = vector.broadcast %c1_i32 : i32 to vector<32x128xi32>
    %22 = arith.andi %20, %21 : vector<32x128xi32>
    %c1_i32_11 = arith.constant 1 : i32
    %23 = vector.broadcast %c1_i32_11 : i32 to vector<32x128xi32>
    %24 = arith.cmpi eq, %22, %23 : vector<32x128xi32>
    %c80_i32_12 = arith.constant 80 : i32
    %25 = vector.broadcast %c80_i32_12 : i32 to vector<32x128xi32>
    %26 = arith.subi %13, %25 : vector<32x128xi32>
    %c2_i32 = arith.constant 2 : i32
    %27 = vector.broadcast %c2_i32 : i32 to vector<32x128xi32>
    %28 = arith.shrsi %26, %27 : vector<32x128xi32>
    %cst_13 = arith.constant 3.200000e+01 : f32
    %cst_14 = arith.constant 3.200000e+01 : f32
    %29 = vector.broadcast %cst_13 : f32 to vector<32x128xf32>
    %30 = vector.broadcast %cst_14 : f32 to vector<32x128xf32>
    %31 = arith.select %24, %29, %30 : vector<32x128xi1>, vector<32x128xf32>
    %c0_i32 = arith.constant 0 : i32
    %32 = vector.broadcast %c0_i32 : i32 to vector<32x128xi32>
    %33 = arith.cmpi eq, %28, %32 : vector<32x128xi32>
    %cst_15 = arith.constant 8.000000e+00 : f32
    %cst_16 = arith.constant 8.000000e+00 : f32
    %34 = vector.broadcast %cst_15 : f32 to vector<32x128xf32>
    %35 = vector.broadcast %cst_16 : f32 to vector<32x128xf32>
    %36 = arith.select %24, %34, %35 : vector<32x128xi1>, vector<32x128xf32>
    %37 = arith.select %33, %36, %31 : vector<32x128xi1>, vector<32x128xf32>
    %c1_i32_17 = arith.constant 1 : i32
    %38 = vector.broadcast %c1_i32_17 : i32 to vector<32x128xi32>
    %39 = arith.cmpi eq, %28, %38 : vector<32x128xi32>
    %cst_18 = arith.constant 1.600000e+01 : f32
    %cst_19 = arith.constant 1.600000e+01 : f32
    %40 = vector.broadcast %cst_18 : f32 to vector<32x128xf32>
    %41 = vector.broadcast %cst_19 : f32 to vector<32x128xf32>
    %42 = arith.select %24, %40, %41 : vector<32x128xi1>, vector<32x128xf32>
    %43 = arith.select %39, %42, %37 : vector<32x128xi1>, vector<32x128xf32>
    %c2_i32_20 = arith.constant 2 : i32
    %44 = vector.broadcast %c2_i32_20 : i32 to vector<32x128xi32>
    %45 = arith.cmpi slt, %20, %44 : vector<32x128xi32>
    %cst_21 = arith.constant 0.000000e+00 : f32
    %46 = vector.broadcast %cst_21 : f32 to vector<32x128xf32>
    %47 = arith.subf %46, %43 : vector<32x128xf32>
    %48 = arith.select %45, %47, %43 : vector<32x128xi1>, vector<32x128xf32>
    %49 = tpu.iota {dimensions = array<i32: 0>} : vector<32x128xi32>
    %c32_i32 = arith.constant 32 : i32
    %50 = arith.muli %arg0, %c32_i32 : i32
    %51 = vector.broadcast %50 : i32 to vector<32x128xi32>
    %52 = arith.addi %49, %51 : vector<32x128xi32>
    %c15_i32 = arith.constant 15 : i32
    %53 = vector.broadcast %c15_i32 : i32 to vector<32x128xi32>
    %54 = arith.andi %52, %53 : vector<32x128xi32>
    %c2_i32_22 = arith.constant 2 : i32
    %55 = vector.broadcast %c2_i32_22 : i32 to vector<32x128xi32>
    %56 = arith.shrsi %54, %55 : vector<32x128xi32>
    %c3_i32_23 = arith.constant 3 : i32
    %57 = vector.broadcast %c3_i32_23 : i32 to vector<32x128xi32>
    %58 = arith.andi %54, %57 : vector<32x128xi32>
    %59 = arith.sitofp %56 : vector<32x128xi32> to vector<32x128xf32>
    %60 = arith.sitofp %58 : vector<32x128xi32> to vector<32x128xf32>
    %61 = arith.select %24, %59, %60 : vector<32x128xi1>, vector<32x128xf32>
    %cst_24 = arith.constant 8.000000e+00 : f32
    %62 = vector.broadcast %cst_24 : f32 to vector<32x128xf32>
    %63 = arith.mulf %61, %62 : vector<32x128xf32>
    %64 = arith.negf %12 : vector<32x128xf32>
    %65 = math.exp %64 : vector<32x128xf32>
    %cst_25 = arith.constant 1.000000e+00 : f32
    %66 = vector.broadcast %cst_25 : f32 to vector<32x128xf32>
    %67 = arith.addf %66, %65 : vector<32x128xf32>
    %68 = arith.divf %66, %67 : vector<32x128xf32>
    %cst_26 = arith.constant 8.000000e+00 : f32
    %69 = vector.broadcast %cst_26 : f32 to vector<32x128xf32>
    %70 = arith.mulf %68, %69 : vector<32x128xf32>
    %71 = arith.addf %70, %63 : vector<32x128xf32>
    %72 = math.exp %12 : vector<32x128xf32>
    %c116_i32 = arith.constant 116 : i32
    %73 = tpu.dynamic_rotate %72 by %c116_i32 dim 1 : vector<32x128xf32>, i32 -> vector<32x128xf32>
    %74 = arith.mulf %48, %73 : vector<32x128xf32>
    %75 = arith.addf %71, %74 : vector<32x128xf32>
    %76 = arith.select %18, %75, %12 : vector<32x128xi1>, vector<32x128xf32>
    %77 = arith.truncf %76 : vector<32x128xf32> to vector<32x128xbf16>
    %c0_27 = arith.constant 0 : index
    %c0_28 = arith.constant 0 : index
    %78 = vector.load %arg5[%c0_27, %c0_28] : memref<32x128xbf16, #tpu.memory_space<vmem>>, vector<32x128xbf16>
    tpu.vector_store %arg5[%c0_27, %c0_28], %77 {strides = array<i32>} : memref<32x128xbf16, #tpu.memory_space<vmem>>, vector<32x128xbf16>,
    return
  }
  func.func @transform_0(%arg0: i32) -> (i32, i32) {
    %c0_i32 = arith.constant 0 : i32
    %c0_i32_0 = arith.constant 0 : i32
    return %arg0, %c0_i32 : i32, i32
  }
  func.func @transform_1(%arg0: i32) -> (i32, i32) {
    %c0_i32 = arith.constant 0 : i32
    %c0_i32_0 = arith.constant 0 : i32
    %c0_i32_1 = arith.constant 0 : i32
    return %c0_i32, %c0_i32_0 : i32, i32
  }
  func.func @transform_2(%arg0: i32) -> (i32, i32) {
    %c0_i32 = arith.constant 0 : i32
    %c0_i32_0 = arith.constant 0 : i32
    %c0_i32_1 = arith.constant 0 : i32
    return %c0_i32, %c0_i32_0 : i32, i32
  }
  func.func @transform_3(%arg0: i32) -> (i32, i32) {
    %c0_i32 = arith.constant 0 : i32
    %c0_i32_0 = arith.constant 0 : i32
    %c0_i32_1 = arith.constant 0 : i32
    return %c0_i32, %c0_i32_0 : i32, i32
  }
  func.func @transform_4(%arg0: i32) -> (i32, i32) {
    %c0_i32 = arith.constant 0 : i32
    %c0_i32_0 = arith.constant 0 : i32
    return %arg0, %c0_i32 : i32, i32
  }
}

</mosaic_0001>

<llo_original>
// kernel: tpu_custom_call.1
$region0: #{tpu_custom_call.1}
  #allocation0 [shape = 'u32[]', space=smem, size = 0x4, offset = 0x4, fixed_abs, tag = 'smem constant byte address 0x4 - core index']
  #allocation1 [shape = 'u32[72,128]{1,0:T(1,128)}', space=vmem, size = 0x9000, scoped, tag = 'internal scratch']
  %s0 = inlined_call_operand.vmem [shape: bf16[32,8], index: 0, kind: input, shape index: {}]
  %s1 = inlined_call_operand.vmem [shape: bf16[8,80], index: 1, kind: input, shape index: {}]
  %s2 = inlined_call_operand.vmem [shape: bf16[80,48], index: 2, kind: input, shape index: {}]
  %s3 = inlined_call_operand.vmem [shape: bf16[48,128], index: 3, kind: input, shape index: {}]
  %s4 = inlined_call_operand.hbm [shape: bf16[32,128], index: 4, kind: output, shape index: {}]
  %s5 = sld [smem:[#allocation0]]
  $region26: #{tpu_custom_call.1} parent=0
    _
  %s7 = ssub.s32 1, %s5
  %s8 = scalar_select 0, %s7, %s5
  $region1: #{tpu_custom_call.1} parent=0
    #allocation2 [shape = 'u8[8192]{0}', space=vmem, size = 0x2000, scoped, tag = 'output window, operand 0, single buffered']
    #allocation3 [shape = 's32[1]{0}', space=sflag, size = 0x4, scoped, tag = 'scoped memory for tpu_custom_call.1']
    %9 = vsyncpa [#allocation3], 0
    // Predicated region
    $region2: #{tpu_custom_call.1} parent=1 // pred_check
      _
    $region3: #{tpu_custom_call.1} parent=1 // pred_check_branch
      %11 = sbr.rel (0) target = $region5
    $region4: #{tpu_custom_call.1} parent=1 // pred_region
      _
    $region5: #{tpu_custom_call.1} parent=1 // pred_fallthru
      _
    // Predicated region
    $region6: #{tpu_custom_call.1} parent=1 // pred_check
      _
    $region7: #{tpu_custom_call.1} parent=1 // pred_check_branch
      %13 = sbr.rel (0) target = $region9
    $region8: #{tpu_custom_call.1} parent=1 // pred_region
      _
    $region9: #{tpu_custom_call.1} parent=1 // pred_fallthru
      _
    // Predicated region
    $region10: #{tpu_custom_call.1} parent=1 // pred_check
      _
    $region11: #{tpu_custom_call.1} parent=1 // pred_check_branch
      %15 = sbr.rel (0) target = $region13
    $region12: #{tpu_custom_call.1} parent=1 // pred_region
      _
    $region13: #{tpu_custom_call.1} parent=1 // pred_fallthru
      _
    // Predicated region
    $region14: #{tpu_custom_call.1} parent=1 // pred_check
      _
    $region15: #{tpu_custom_call.1} parent=1 // pred_check_branch
      %17 = sbr.rel (0) target = $region17
    $region16: #{tpu_custom_call.1} parent=1 // pred_region
      _
    $region17: #{tpu_custom_call.1} parent=1 // pred_fallthru
      _
    %v19 = vld [vmem:[%s0] sm:$0xf]
    %v20 = vld [vmem:[%s0 + $0x4] sm:$0xf]
    %v21 = vld [vmem:[%s0 + $0x8] sm:$0xf]
    %v22 = vld [vmem:[%s0 + $0xc] sm:$0xf]
    %v23 = vld [vmem:[%s1] sm:$0xf]
    %v28 = vunpack.c.l.b16 %v19
    %v29 = vunpack.c.l.b16 %v20
    %v30 = vunpack.c.l.b16 %v21
    %v31 = vunpack.c.l.b16 %v22
    %v32 = vpack.c.b16 %v29, %v28
    %v33 = vpack.c.b16 %v31, %v30
    %vm34 = vcmask 64512
    %v36 = vsel %vm34, %v32, 0
    %v39 = vsel %vm34, %v33, 0
    %vm41 = vcmask 1043456
    %v43 = vsel %vm41, %v23, 0
    %45 = vmatpush.bf16.msra.mxu0 0
    %46 = vmatpush.bf16.msra.mxu0 0
    %47 = vmatpush.bf16.msra.mxu0 0
    %48 = vmatpush.bf16.msra.mxu0 0
    %49 = vmatpush.bf16.msra.mxu0 0
    %50 = vmatpush.bf16.msra.mxu0 0
    %51 = vmatpush.bf16.msra.mxu0 0
    %52 = vmatpush.bf16.msra.mxu0 %v43
    %53 = vmatmul.bf16.gmra.mxu0 %v36
    %v54 = vpop.f32.mrf.mxu0
    %v55 = vadd.f32 0.0, %v54
    %v56 = vpop.f32.mrf.mxu0
    %v57 = vadd.f32 0.0, %v56
    %58 = vmatmul.bf16.gmra.mxu0 %v39
    %v59 = vpop.f32.mrf.mxu0
    %v60 = vadd.f32 0.0, %v59
    %v61 = vpop.f32.mrf.mxu0
    %v62 = vadd.f32 0.0, %v61
    %63 = vdwg.mxu0
    %v64 = vmax.f32 %v55, 0.0
    %v65 = vmax.f32 %v57, 0.0
    %v66 = vmax.f32 %v60, 0.0
    %v67 = vmax.f32 %v62, 0.0
    %v68 = vpack.c.bf16 %v65, %v64
    %v69 = vpack.c.bf16 %v67, %v66
    %v70 = vld [vmem:[%s2] sm:$0xf]
    %v71 = vld [vmem:[%s2 + $0x4] sm:$0xf]
    %v72 = vld [vmem:[%s2 + $0x8] sm:$0xf]
    %v73 = vld [vmem:[%s2 + $0xc] sm:$0xf]
    %v74 = vld [vmem:[%s2 + $0x10] sm:$0xf]
    %v75 = vld [vmem:[%s2 + $0x14] sm:$0xf]
    %v76 = vld [vmem:[%s2 + $0x18] sm:$0xf]
    %v77 = vld [vmem:[%s2 + $0x1c] sm:$0xf]
    %v78 = vld [vmem:[%s2 + $0x20] sm:$0xf]
    %v79 = vld [vmem:[%s2 + $0x24] sm:$0xf]
    %v90 = vunpack.c.l.b16 %v70
    %v91 = vunpack.c.l.b16 %v71
    %v92 = vunpack.c.l.b16 %v72
    %v93 = vunpack.c.l.b16 %v73
    %v94 = vunpack.c.l.b16 %v74
    %v95 = vunpack.c.l.b16 %v75
    %v96 = vunpack.c.l.b16 %v76
    %v97 = vunpack.c.l.b16 %v77
    %v98 = vunpack.c.l.b16 %v78
    %v99 = vunpack.c.l.b16 %v79
    %v100 = vpack.c.b16 %v91, %v90
    %v101 = vpack.c.b16 %v93, %v92
    %v102 = vpack.c.b16 %v95, %v94
    %v103 = vpack.c.b16 %v97, %v96
    %v104 = vpack.c.b16 %v99, %v98
    %vm110 = vcmask 654336
    %v112 = vsel %vm110, %v68, 0
    %v115 = vsel %vm110, %v69, 0
    %117 = vmatpush.bf16.msra.mxu0 0
    %118 = vmatpush.bf16.msra.mxu0 0
    %119 = vmatpush.bf16.msra.mxu0 0
    %120 = vmatpush.bf16.msra.mxu0 %v104
    %121 = vmatpush.bf16.msra.mxu0 %v103
    %122 = vmatpush.bf16.msra.mxu0 %v102
    %123 = vmatpush.bf16.msra.mxu0 %v101
    %124 = vmatpush.bf16.msra.mxu0 %v100
    %125 = vmatmul.bf16.gmra.mxu0 %v112
    %v126 = vpop.f32.mrf.mxu0
    %v127 = vadd.f32 0.0, %v126
    %v128 = vpop.f32.mrf.mxu0
    %v129 = vadd.f32 0.0, %v128
    %130 = vmatmul.bf16.gmra.mxu0 %v115
    %v131 = vpop.f32.mrf.mxu0
    %v132 = vadd.f32 0.0, %v131
    %v133 = vpop.f32.mrf.mxu0
    %v134 = vadd.f32 0.0, %v133
    %135 = vdwg.mxu0
    %v136 = vmax.f32 %v127, 0.0
    %v137 = vmax.f32 %v129, 0.0
    %v138 = vmax.f32 %v132, 0.0
    %v139 = vmax.f32 %v134, 0.0
    %v140 = vpack.c.bf16 %v137, %v136
    %v141 = vpack.c.bf16 %v139, %v138
    %v142 = vld [vmem:[%s3] sm:$0xf]
    %v143 = vld [vmem:[%s3 + $0x4] sm:$0xf]
    %v144 = vld [vmem:[%s3 + $0x8] sm:$0xf]
    %v145 = vld [vmem:[%s3 + $0xc] sm:$0xf]
    %v146 = vld [vmem:[%s3 + $0x10] sm:$0xf]
    %v147 = vld [vmem:[%s3 + $0x14] sm:$0xf]
    %v154 = vunpack.c.l.b16 %v142
    %v155 = vunpack.c.l.b16 %v143
    %v156 = vunpack.c.l.b16 %v144
    %v157 = vunpack.c.l.b16 %v145
    %v158 = vunpack.c.l.b16 %v146
    %v159 = vunpack.c.l.b16 %v147
    %v160 = vpack.c.b16 %v155, %v154
    %v161 = vpack.c.b16 %v157, %v156
    %v162 = vpack.c.b16 %v159, %v158
    %vm166 = vcmask 392192
    %v168 = vsel %vm166, %v140, 0
    %v171 = vsel %vm166, %v141, 0
    %173 = vmatpush.bf16.msra.mxu0 0
    %174 = vmatpush.bf16.msra.mxu0 0
    %175 = vmatpush.bf16.msra.mxu0 0
    %176 = vmatpush.bf16.msra.mxu0 0
    %177 = vmatpush.bf16.msra.mxu0 0
    %178 = vmatpush.bf16.msra.mxu0 %v162
    %179 = vmatpush.bf16.msra.mxu0 %v161
    %180 = vmatpush.bf16.msra.mxu0 %v160
    %181 = vmatmul.bf16.gmra.mxu0 %v168
    %v182 = vpop.f32.mrf.mxu0
    %v183 = vadd.f32 0.0, %v182
    %v184 = vpop.f32.mrf.mxu0
    %v185 = vadd.f32 0.0, %v184
    %186 = vmatmul.bf16.gmra.mxu0 %v171
    %v187 = vpop.f32.mrf.mxu0
    %v188 = vadd.f32 0.0, %v187
    %v189 = vpop.f32.mrf.mxu0
    %v190 = vadd.f32 0.0, %v189
    %191 = vdwg.mxu0
    %v192 = vlaneseq
    %v193 = vand.u32 %v192, 127
    %vm194 = vcmp.ge.s32.totalorder %v193, 80
    %vm195 = vcmp.lt.s32.totalorder %v193, 92
    %vm196 = vmand %vm194, %vm195
    %v197 = vand.u32 %v193, 3
    %v198 = vand.u32 %v197, 1
    %vm199 = vcmp.eq.s32.totalorder %v198, 1
    %v200 = vsub.s32 %v193, 80
    %v201 = vshra.s32 %v200, 2
    %vm202 = vcmp.eq.s32.totalorder %v201, 0
    %v203 = vsel %vm202, 8.0, 32.0
    %vm204 = vcmp.eq.s32.totalorder %v201, 1
    %v205 = vsel %vm204, 16.0, %v203
    %vm206 = vcmp.lt.s32.totalorder %v197, 2
    %v207 = vsub.f32 0.0, %v205
    %v208 = vsel %vm206, %v207, %v205
    %v209 = vlaneseq
    %v210 = vshrl.u32 %v209, 7
    %v211 = vadd.s32 %v210, 8
    %v212 = vadd.s32 %v210, 16
    %v213 = vadd.s32 %v210, 24
    %s214 = smul.u32 0, 32
    %v215 = vstv %s214
    %v216 = vadd.s32 %v210, %v215
    %v217 = vadd.s32 %v211, %v215
    %v218 = vadd.s32 %v212, %v215
    %v219 = vadd.s32 %v213, %v215
    %v220 = vand.u32 %v216, 15
    %v221 = vand.u32 %v217, 15
    %v222 = vand.u32 %v218, 15
    %v223 = vand.u32 %v219, 15
    %v224 = vshra.s32 %v220, 2
    %v225 = vshra.s32 %v221, 2
    %v226 = vshra.s32 %v222, 2
    %v227 = vshra.s32 %v223, 2
    %v228 = vand.u32 %v220, 3
    %v229 = vand.u32 %v221, 3
    %v230 = vand.u32 %v222, 3
    %v231 = vand.u32 %v223, 3
    %v232 = vcvt.s32.f32 %v224
    %v233 = vcvt.s32.f32 %v225
    %v234 = vcvt.s32.f32 %v226
    %v235 = vcvt.s32.f32 %v227
    %v236 = vcvt.s32.f32 %v228
    %v237 = vcvt.s32.f32 %v229
    %v238 = vcvt.s32.f32 %v230
    %v239 = vcvt.s32.f32 %v231
    %v240 = vsel %vm199, %v232, %v236
    %v241 = vsel %vm199, %v233, %v237
    %v242 = vsel %vm199, %v234, %v238
    %v243 = vsel %vm199, %v235, %v239
    %v244 = vmul.f32 %v240, 8.0
    %v245 = vmul.f32 %v241, 8.0
    %v246 = vmul.f32 %v242, 8.0
    %v247 = vmul.f32 %v243, 8.0
    %v248 = vxor.u32 %v183, 2147483648
    %v249 = vxor.u32 %v185, 2147483648
    %v250 = vxor.u32 %v188, 2147483648
    %v251 = vxor.u32 %v190, 2147483648
    %v252 = vmul.f32 %v248, 1.442695
    %v253 = vpow.pop %v252
    %v254 = vmul.f32 %v249, 1.442695
    %v255 = vpow.pop %v254
    %v256 = vmul.f32 %v250, 1.442695
    %v257 = vpow.pop %v256
    %v258 = vmul.f32 %v251, 1.442695
    %v259 = vpow.pop %v258
    %v260 = vadd.f32 %v253, 1.0
    %v261 = vadd.f32 %v255, 1.0
    %v262 = vadd.f32 %v257, 1.0
    %v263 = vadd.f32 %v259, 1.0
    %v264 = vrcp.pop %v260
    %v265 = vmul.f32 %v260, %v264
    %v266 = vsub.f32 1.0, %v265
    %v267 = vmul.f32 %v264, %v266
    %v268 = vadd.f32 %v264, %v267
    %vm269 = vweird.f32 %v260
    %vm270 = vweird.f32 %v264
    %vm271 = vmor %vm269, %vm270
    %v272 = vsel %vm271, %v264, %v268
    %v273 = vand.u32 2147483647, %v260
    %vm274 = vcmp.eq.f32.partialorder %v273, 8.507059e+37
    %v275 = vand.u32 %v260, 2147483648
    %v276 = vor.u32 1.1754944e-38, %v275
    %v277 = vsel %vm274, %v276, %v272
    %v278 = vmul.f32 1.0, %v277
    %v279 = vrcp.pop %v261
    %v280 = vmul.f32 %v261, %v279
    %v281 = vsub.f32 1.0, %v280
    %v282 = vmul.f32 %v279, %v281
    %v283 = vadd.f32 %v279, %v282
    %vm284 = vweird.f32 %v261
    %vm285 = vweird.f32 %v279
    %vm286 = vmor %vm284, %vm285
    %v287 = vsel %vm286, %v279, %v283
    %v288 = vand.u32 2147483647, %v261
    %vm289 = vcmp.eq.f32.partialorder %v288, 8.507059e+37
    %v290 = vand.u32 %v261, 2147483648
    %v291 = vor.u32 1.1754944e-38, %v290
    %v292 = vsel %vm289, %v291, %v287
    %v293 = vmul.f32 1.0, %v292
    %v294 = vrcp.pop %v262
    %v295 = vmul.f32 %v262, %v294
    %v296 = vsub.f32 1.0, %v295
    %v297 = vmul.f32 %v294, %v296
    %v298 = vadd.f32 %v294, %v297
    %vm299 = vweird.f32 %v262
    %vm300 = vweird.f32 %v294
    %vm301 = vmor %vm299, %vm300
    %v302 = vsel %vm301, %v294, %v298
    %v303 = vand.u32 2147483647, %v262
    %vm304 = vcmp.eq.f32.partialorder %v303, 8.507059e+37
    %v305 = vand.u32 %v262, 2147483648
    %v306 = vor.u32 1.1754944e-38, %v305
    %v307 = vsel %vm304, %v306, %v302
    %v308 = vmul.f32 1.0, %v307
    %v309 = vrcp.pop %v263
    %v310 = vmul.f32 %v263, %v309
    %v311 = vsub.f32 1.0, %v310
    %v312 = vmul.f32 %v309, %v311
    %v313 = vadd.f32 %v309, %v312
    %vm314 = vweird.f32 %v263
    %vm315 = vweird.f32 %v309
    %vm316 = vmor %vm314, %vm315
    %v317 = vsel %vm316, %v309, %v313
    %v318 = vand.u32 2147483647, %v263
    %vm319 = vcmp.eq.f32.partialorder %v318, 8.507059e+37
    %v320 = vand.u32 %v263, 2147483648
    %v321 = vor.u32 1.1754944e-38, %v320
    %v322 = vsel %vm319, %v321, %v317
    %v323 = vmul.f32 1.0, %v322
    %v324 = vmul.f32 %v278, 8.0
    %v325 = vmul.f32 %v293, 8.0
    %v326 = vmul.f32 %v308, 8.0
    %v327 = vmul.f32 %v323, 8.0
    %v328 = vadd.f32 %v324, %v244
    %v329 = vadd.f32 %v325, %v245
    %v330 = vadd.f32 %v326, %v246
    %v331 = vadd.f32 %v327, %v247
    %v332 = vmul.f32 %v183, 1.442695
    %v333 = vpow.pop %v332
    %v334 = vmul.f32 %v185, 1.442695
    %v335 = vpow.pop %v334
    %v336 = vmul.f32 %v188, 1.442695
    %v337 = vpow.pop %v336
    %v338 = vmul.f32 %v190, 1.442695
    %v339 = vpow.pop %v338
    %340 = vrot.lane.b32.xlu0 %v333, 116
    %v341 = vpop.permute.xlu0 %340
    %342 = vrot.lane.b32.xlu0 %v335, 116
    %v343 = vpop.permute.xlu0 %342
    %344 = vrot.lane.b32.xlu0 %v337, 116
    %v345 = vpop.permute.xlu0 %344
    %346 = vrot.lane.b32.xlu0 %v339, 116
    %v347 = vpop.permute.xlu0 %346
    %v348 = vmul.f32 %v208, %v341
    %v349 = vmul.f32 %v208, %v343
    %v350 = vmul.f32 %v208, %v345
    %v351 = vmul.f32 %v208, %v347
    %v352 = vadd.f32 %v328, %v348
    %v353 = vadd.f32 %v329, %v349
    %v354 = vadd.f32 %v330, %v350
    %v355 = vadd.f32 %v331, %v351
    %v356 = vsel %vm196, %v352, %v183
    %v357 = vsel %vm196, %v353, %v185
    %v358 = vsel %vm196, %v354, %v188
    %v359 = vsel %vm196, %v355, %v190
    %v360 = vpack.c.bf16 %v356, %v356
    %v361 = vpack.c.bf16 %v357, %v357
    %v362 = vpack.c.bf16 %v358, %v358
    %v363 = vpack.c.bf16 %v359, %v359
    %364 = vst [vmem:[#allocation2] sm:$0xf] %v360
    %365 = vst [vmem:[#allocation2 + $0x4] sm:$0xf] %v361
    %366 = vst [vmem:[#allocation2 + $0x8] sm:$0xf] %v362
    %367 = vst [vmem:[#allocation2 + $0xc] sm:$0xf] %v363
    // Predicated region
    $region18: #{tpu_custom_call.1} parent=1 // pred_check
      _
    $region19: #{tpu_custom_call.1} parent=1 // pred_check_branch
      %369 = sbr.rel (0) target = $region21
    $region20: #{tpu_custom_call.1} parent=1 // pred_region
      %371 = vsyncadd [#allocation3], 0
      %s372 = sshll.u32 [#allocation2], 4
      %s373 = int_to_ptr.vmem [resolvable:$true] %s372
      %s374 = sshll.u32 %s4, 4
      %s375 = int_to_ptr.hbm [resolvable:$true] %s374
      %380 = dma.vmem_to_hbm [thread:$0]  %s373, 256, %s375, [#allocation3], 64, 64, 4
    $region21: #{tpu_custom_call.1} parent=1 // pred_fallthru
      _
    // Predicated region
    $region22: #{tpu_custom_call.1} parent=1 // pred_check
      _
    $region23: #{tpu_custom_call.1} parent=1 // pred_check_branch
      %382 = sbr.rel (0) target = $region25
    $region24: #{tpu_custom_call.1} parent=1 // pred_region
      %384 = dma.done [#allocation3], 256
    $region25: #{tpu_custom_call.1} parent=1 // pred_fallthru
      _
    %385 = vsyncpa [#allocation3], 1

</llo_original>
